<compile_context>
chip_gen: v7x
topology: tpu7x:2x2x1
jax: 0.10.0
libtpu: 0.0.40
codegen_flags: <defaults>
</compile_context>

<pallas_src>
import math

import jax
import jax.numpy as jnp
from jax.experimental import pallas as pl
from jax.experimental.pallas import tpu as pltpu


def _ea_kernel(x_ref, w1_ref, b1_ref, wk_ref, wv_ref, w2_ref, s2_ref, t2_ref,
               o_ref):
    # x_ref:  (1, C, HW)   current batch element (original input, also residual)
    # w1_ref: (C, C)   conv1 weight        b1_ref: (C, 1) conv1 bias
    # wk_ref: (K, C)   linear_0 weight     wv_ref: (C, K) linear_1 weight
    # w2_ref: (C, C)   conv2 weight        s2/t2:  (C, 1) eval-BN scale / shift
    # o_ref:  (1, C, HW)
    x = x_ref[0].astype(jnp.float32)                                  # (C, HW)

    # conv1 (1x1 conv with bias) == W1 @ x + b1
    y = jnp.dot(w1_ref[...], x,
                preferred_element_type=jnp.float32) + b1_ref[...]     # (C, HW)

    # linear_0 (Conv1d c->k, kernel 1, no bias) == Wk @ y
    attn = jnp.dot(wk_ref[...], y,
                   preferred_element_type=jnp.float32)                # (K, HW)

    # softmax over the spatial (lane) axis
    attn = attn - jnp.max(attn, axis=-1, keepdims=True)
    attn = jnp.exp(attn)
    attn = attn / jnp.sum(attn, axis=-1, keepdims=True)

    # normalisation over the k (sublane) axis: attn / (1e-9 + sum_k attn)
    attn = attn / (1e-9 + jnp.sum(attn, axis=0, keepdims=True))

    # linear_1 (Conv1d k->c, kernel 1, no bias) == Wv @ attn
    x2 = jnp.dot(wv_ref[...], attn,
                 preferred_element_type=jnp.float32)                  # (C, HW)

    # conv2 (1x1 conv, no bias) + eval-mode BatchNorm (scale / shift)
    z = jnp.dot(w2_ref[...], x2,
                preferred_element_type=jnp.float32) * s2_ref[...] + t2_ref[...]

    # residual add + ReLU
    o_ref[0] = jnp.maximum(z + x, 0.0).astype(o_ref.dtype)


def external_attention_pallas(x, conv1_w, conv1_b, lin0_w, lin1_w, conv2_w,
                              bn_gamma, bn_beta, bn_mean, bn_var,
                              bn_eps=1e-5):
    """x: (N, C, H, W).  conv1_w: (C, C), conv1_b: (C,), lin0_w: (K, C),
    lin1_w: (C, K), conv2_w: (C, C), BN params: (C,)."""
    N, C, H, W = x.shape
    K = lin0_w.shape[0]
    HW = H * W
    x_flat = x.reshape(N, C, HW)

    # Fold BatchNorm (eval mode) into a per-channel scale / shift.
    inv_std = 1.0 / jnp.sqrt(bn_var.astype(jnp.float32) + bn_eps)
    s2 = (bn_gamma.astype(jnp.float32) * inv_std).reshape(C, 1)
    t2 = (bn_beta.astype(jnp.float32)
          - bn_mean.astype(jnp.float32) * bn_gamma.astype(jnp.float32)
          * inv_std).reshape(C, 1)
    b1 = conv1_b.astype(jnp.float32).reshape(C, 1)

    w1 = conv1_w.astype(jnp.float32)
    wk = lin0_w.astype(jnp.float32)
    wv = lin1_w.astype(jnp.float32)
    w2 = conv2_w.astype(jnp.float32)

    # Explicit VMEM budget: double-buffered x/out blocks + weights + f32
    # intermediates (y, attn, x2/z), with headroom; clamp to [32 MiB, 64 MiB]
    # so it is valid on v5e / v6e / v7x.
    itemsize = jnp.dtype(x.dtype).itemsize
    xo_bytes = 2 * 2 * C * HW * itemsize
    w_bytes = 2 * 4 * (2 * C * C + 2 * C * K + 3 * C)
    interm_bytes = 4 * (4 * C + K) * HW
    vmem_limit = int(min(max(xo_bytes + w_bytes + interm_bytes + (8 << 20),
                             32 << 20), 64 << 20))

    const = lambda n: (0, 0)
    out_flat = pl.pallas_call(
        _ea_kernel,
        out_shape=jax.ShapeDtypeStruct((N, C, HW), x.dtype),
        grid_spec=pltpu.PrefetchScalarGridSpec(
            num_scalar_prefetch=0,
            grid=(N,),
            in_specs=[
                pl.BlockSpec((1, C, HW), lambda n: (n, 0, 0)),
                pl.BlockSpec((C, C), const),   # conv1 weight
                pl.BlockSpec((C, 1), const),   # conv1 bias
                pl.BlockSpec((K, C), const),   # linear_0 weight
                pl.BlockSpec((C, K), const),   # linear_1 weight
                pl.BlockSpec((C, C), const),   # conv2 weight
                pl.BlockSpec((C, 1), const),   # BN scale
                pl.BlockSpec((C, 1), const),   # BN shift
            ],
            out_specs=pl.BlockSpec((1, C, HW), lambda n: (n, 0, 0)),
        ),
        compiler_params=pltpu.CompilerParams(
            dimension_semantics=("parallel",),
            vmem_limit_bytes=vmem_limit),
    )(x_flat, w1, b1, wk, wv, w2, s2, t2)

    return out_flat.reshape(N, C, H, W)


def _ea_reference(x, conv1_w, conv1_b, lin0_w, lin1_w, conv2_w,
                  bn_gamma, bn_beta, bn_mean, bn_var, bn_eps=1e-5):
    """Pure-JAX reference mirroring the PyTorch forward (eval-mode BN)."""
    N, C, H, W = x.shape
    HW = H * W
    xf = x.reshape(N, C, HW).astype(jnp.float32)
    hp = jax.lax.Precision.HIGHEST
    y = jnp.einsum("oc,ncp->nop", conv1_w, xf, precision=hp) \
        + conv1_b[None, :, None]
    attn = jnp.einsum("kc,ncp->nkp", lin0_w, y, precision=hp)
    attn = jax.nn.softmax(attn, axis=-1)
    attn = attn / (1e-9 + jnp.sum(attn, axis=1, keepdims=True))
    x2 = jnp.einsum("ck,nkp->ncp", lin1_w, attn, precision=hp)
    z = jnp.einsum("oc,ncp->nop", conv2_w, x2, precision=hp)
    scale = bn_gamma / jnp.sqrt(bn_var + bn_eps)
    z = z * scale[None, :, None] + (bn_beta - bn_mean * scale)[None, :, None]
    out = jnp.maximum(z + xf, 0.0)
    return out.reshape(N, C, H, W).astype(x.dtype)


if __name__ == "__main__":
    # Small shapes consistent with the module: batch=2, channels=16, 16x16.
    # (the module fixes the low-rank dim k=64)
    N, C, H, W = 2, 16, 16, 16
    K = 64

    key = jax.random.PRNGKey(0)
    ks = jax.random.split(key, 10)
    x = jax.random.normal(ks[0], (N, C, H, W), dtype=jnp.float32)

    bnd_c = 1.0 / math.sqrt(C)
    bnd_k = 1.0 / math.sqrt(K)
    conv1_w = jax.random.uniform(ks[1], (C, C), jnp.float32, -bnd_c, bnd_c)
    conv1_b = jax.random.uniform(ks[2], (C,), jnp.float32, -bnd_c, bnd_c)
    lin0_w = jax.random.uniform(ks[3], (K, C), jnp.float32, -bnd_c, bnd_c)
    lin1_w = jax.random.uniform(ks[4], (C, K), jnp.float32, -bnd_k, bnd_k)
    conv2_w = jax.random.uniform(ks[5], (C, C), jnp.float32, -bnd_c, bnd_c)
    bn_gamma = jax.random.uniform(ks[6], (C,), jnp.float32, 0.5, 1.5)
    bn_beta = jax.random.uniform(ks[7], (C,), jnp.float32, -0.5, 0.5)
    bn_mean = jax.random.uniform(ks[8], (C,), jnp.float32, -0.2, 0.2)
    bn_var = jax.random.uniform(ks[9], (C,), jnp.float32, 0.5, 1.5)

    out = external_attention_pallas(x, conv1_w, conv1_b, lin0_w, lin1_w,
                                    conv2_w, bn_gamma, bn_beta, bn_mean,
                                    bn_var)
    out = jax.block_until_ready(out)

    ref = _ea_reference(x, conv1_w, conv1_b, lin0_w, lin1_w, conv2_w,
                        bn_gamma, bn_beta, bn_mean, bn_var)
    assert out.shape == x.shape and out.dtype == x.dtype
    assert jnp.allclose(out, ref, atol=1e-4, rtol=1e-3)

    print("KERNEL_OK")
</pallas_src>

<mosaic_0001>
module attributes {stable_mosaic.version = 11 : i64} {
  func.func @_ea_kernel(%arg0: i32, %arg1: memref<1x16x256xf32, #tpu.memory_space<vmem>>, %arg2: memref<16x16xf32, #tpu.memory_space<vmem>>, %arg3: memref<16x1xf32, #tpu.memory_space<vmem>>, %arg4: memref<64x16xf32, #tpu.memory_space<vmem>>, %arg5: memref<16x64xf32, #tpu.memory_space<vmem>>, %arg6: memref<16x16xf32, #tpu.memory_space<vmem>>, %arg7: memref<16x1xf32, #tpu.memory_space<vmem>>, %arg8: memref<16x1xf32, #tpu.memory_space<vmem>>, %arg9: memref<1x16x256xf32, #tpu.memory_space<vmem>>) attributes {dimension_semantics = [#tpu.dimension_semantics<parallel>], iteration_bounds = array<i64: 2>, scalar_prefetch = 0 : i64, scratch_operands = 0 : i64, tpu.core_type = #tpu.core_type<tc>, window_params = [{transform_indices = @transform_0, window_bounds = array<i64: 1, 16, 256>}, {pipeline_mode = #tpu.pipeline_mode<synchronous>, transform_indices = @transform_1, window_bounds = array<i64: 16, 16>}, {pipeline_mode = #tpu.pipeline_mode<synchronous>, transform_indices = @transform_2, window_bounds = array<i64: 16, 1>}, {pipeline_mode = #tpu.pipeline_mode<synchronous>, transform_indices = @transform_3, window_bounds = array<i64: 64, 16>}, {pipeline_mode = #tpu.pipeline_mode<synchronous>, transform_indices = @transform_4, window_bounds = array<i64: 16, 64>}, {pipeline_mode = #tpu.pipeline_mode<synchronous>, transform_indices = @transform_5, window_bounds = array<i64: 16, 16>}, {pipeline_mode = #tpu.pipeline_mode<synchronous>, transform_indices = @transform_6, window_bounds = array<i64: 16, 1>}, {pipeline_mode = #tpu.pipeline_mode<synchronous>, transform_indices = @transform_7, window_bounds = array<i64: 16, 1>}, {transform_indices = @transform_8, window_bounds = array<i64: 1, 16, 256>}]} {
    %c0 = arith.constant 0 : index
    %c0_0 = arith.constant 0 : index
    %c0_1 = arith.constant 0 : index
    %0 = vector.load %arg1[%c0, %c0_0, %c0_1] : memref<1x16x256xf32, #tpu.memory_space<vmem>>, vector<1x16x256xf32>
    %1 = vector.shape_cast %0 : vector<1x16x256xf32> to vector<16x256xf32>
    %c0_2 = arith.constant 0 : index
    %c0_3 = arith.constant 0 : index
    %2 = vector.load %arg2[%c0_2, %c0_3] : memref<16x16xf32, #tpu.memory_space<vmem>>, vector<16x16xf32>
    %cst = arith.constant dense<0.000000e+00> : vector<16x256xf32>
    %3 = tpu.matmul %2, %1, %cst {dimension_numbers = #tpu.dot_dimension_numbers<[1], [0], [0], [1], [0, 0, 1, 1], [], []>} : vector<16x16xf32>, vector<16x256xf32>, vector<16x256xf32> -> vector<16x256xf32>
    %c0_4 = arith.constant 0 : index
    %c0_5 = arith.constant 0 : index
    %4 = vector.load %arg3[%c0_4, %c0_5] : memref<16x1xf32, #tpu.memory_space<vmem>>, vector<16x1xf32>
    %5 = vector.broadcast %4 : vector<16x1xf32> to vector<16x256xf32>
    %6 = arith.addf %3, %5 : vector<16x256xf32>
    %c0_6 = arith.constant 0 : index
    %c0_7 = arith.constant 0 : index
    %7 = vector.load %arg4[%c0_6, %c0_7] : memref<64x16xf32, #tpu.memory_space<vmem>>, vector<64x16xf32>
    %cst_8 = arith.constant dense<0.000000e+00> : vector<64x256xf32>
    %8 = tpu.matmul %7, %6, %cst_8 {dimension_numbers = #tpu.dot_dimension_numbers<[1], [0], [0], [1], [0, 0, 1, 1], [], []>} : vector<64x16xf32>, vector<16x256xf32>, vector<64x256xf32> -> vector<64x256xf32>
    %cst_9 = arith.constant dense<0xFF800000> : vector<64xf32>
    %9 = vector.multi_reduction <maximumf>, %8, %cst_9 [1] : vector<64x256xf32> to vector<64xf32>
    %10 = vector.shape_cast %9 : vector<64xf32> to vector<64x1xf32>
    %11 = vector.broadcast %10 : vector<64x1xf32> to vector<64x256xf32>
    %12 = arith.subf %8, %11 : vector<64x256xf32>
    %13 = math.exp %12 : vector<64x256xf32>
    %cst_10 = arith.constant dense<0.000000e+00> : vector<64xf32>
    %14 = vector.multi_reduction <add>, %13, %cst_10 [1] : vector<64x256xf32> to vector<64xf32>
    %15 = vector.shape_cast %14 : vector<64xf32> to vector<64x1xf32>
    %16 = vector.broadcast %15 : vector<64x1xf32> to vector<64x256xf32>
    %17 = arith.divf %13, %16 : vector<64x256xf32>
    %cst_11 = arith.constant dense<0.000000e+00> : vector<256xf32>
    %18 = vector.multi_reduction <add>, %17, %cst_11 [0] : vector<64x256xf32> to vector<256xf32>
    %19 = vector.shape_cast %18 : vector<256xf32> to vector<1x256xf32>
    %cst_12 = arith.constant 9.99999971E-10 : f32
    %20 = vector.broadcast %cst_12 : f32 to vector<1x256xf32>
    %21 = arith.addf %20, %19 : vector<1x256xf32>
    %22 = vector.broadcast %21 : vector<1x256xf32> to vector<64x256xf32>
    %23 = arith.divf %17, %22 : vector<64x256xf32>
    %c0_13 = arith.constant 0 : index
    %c0_14 = arith.constant 0 : index
    %24 = vector.load %arg5[%c0_13, %c0_14] : memref<16x64xf32, #tpu.memory_space<vmem>>, vector<16x64xf32>
    %cst_15 = arith.constant dense<0.000000e+00> : vector<16x256xf32>
    %25 = tpu.matmul %24, %23, %cst_15 {dimension_numbers = #tpu.dot_dimension_numbers<[1], [0], [0], [1], [0, 0, 1, 1], [], []>} : vector<16x64xf32>, vector<64x256xf32>, vector<16x256xf32> -> vector<16x256xf32>
    %c0_16 = arith.constant 0 : index
    %c0_17 = arith.constant 0 : index
    %26 = vector.load %arg6[%c0_16, %c0_17] : memref<16x16xf32, #tpu.memory_space<vmem>>, vector<16x16xf32>
    %cst_18 = arith.constant dense<0.000000e+00> : vector<16x256xf32>
    %27 = tpu.matmul %26, %25, %cst_18 {dimension_numbers = #tpu.dot_dimension_numbers<[1], [0], [0], [1], [0, 0, 1, 1], [], []>} : vector<16x16xf32>, vector<16x256xf32>, vector<16x256xf32> -> vector<16x256xf32>
    %c0_19 = arith.constant 0 : index
    %c0_20 = arith.constant 0 : index
    %28 = vector.load %arg7[%c0_19, %c0_20] : memref<16x1xf32, #tpu.memory_space<vmem>>, vector<16x1xf32>
    %29 = vector.broadcast %28 : vector<16x1xf32> to vector<16x256xf32>
    %30 = arith.mulf %27, %29 : vector<16x256xf32>
    %c0_21 = arith.constant 0 : index
    %c0_22 = arith.constant 0 : index
    %31 = vector.load %arg8[%c0_21, %c0_22] : memref<16x1xf32, #tpu.memory_space<vmem>>, vector<16x1xf32>
    %32 = vector.broadcast %31 : vector<16x1xf32> to vector<16x256xf32>
    %33 = arith.addf %30, %32 : vector<16x256xf32>
    %34 = arith.addf %33, %1 : vector<16x256xf32>
    %cst_23 = arith.constant 0.000000e+00 : f32
    %35 = vector.broadcast %cst_23 : f32 to vector<16x256xf32>
    %36 = arith.maximumf %34, %35 : vector<16x256xf32>
    %c0_24 = arith.constant 0 : index
    %c0_25 = arith.constant 0 : index
    %c0_26 = arith.constant 0 : index
    %37 = vector.load %arg9[%c0_24, %c0_25, %c0_26] : memref<1x16x256xf32, #tpu.memory_space<vmem>>, vector<1x16x256xf32>
    %38 = vector.shape_cast %37 : vector<1x16x256xf32> to vector<16x256xf32>
    %39 = vector.shape_cast %36 : vector<16x256xf32> to vector<1x16x256xf32>
    tpu.vector_store %arg9[%c0_24, %c0_25, %c0_26], %39 {strides = array<i32>} : memref<1x16x256xf32, #tpu.memory_space<vmem>>, vector<1x16x256xf32>,
    return
  }
  func.func @transform_0(%arg0: i32) -> (i32, i32, i32) {
    %c0_i32 = arith.constant 0 : i32
    %c0_i32_0 = arith.constant 0 : i32
    %c0_i32_1 = arith.constant 0 : i32
    return %arg0, %c0_i32, %c0_i32_0 : i32, i32, i32
  }
  func.func @transform_1(%arg0: i32) -> (i32, i32) {
    %c0_i32 = arith.constant 0 : i32
    %c0_i32_0 = arith.constant 0 : i32
    %c0_i32_1 = arith.constant 0 : i32
    return %c0_i32, %c0_i32_0 : i32, i32
  }
  func.func @transform_2(%arg0: i32) -> (i32, i32) {
    %c0_i32 = arith.constant 0 : i32
    %c0_i32_0 = arith.constant 0 : i32
    %c0_i32_1 = arith.constant 0 : i32
    return %c0_i32, %c0_i32_0 : i32, i32
  }
  func.func @transform_3(%arg0: i32) -> (i32, i32) {
    %c0_i32 = arith.constant 0 : i32
    %c0_i32_0 = arith.constant 0 : i32
    %c0_i32_1 = arith.constant 0 : i32
    return %c0_i32, %c0_i32_0 : i32, i32
  }
  func.func @transform_4(%arg0: i32) -> (i32, i32) {
    %c0_i32 = arith.constant 0 : i32
    %c0_i32_0 = arith.constant 0 : i32
    %c0_i32_1 = arith.constant 0 : i32
    return %c0_i32, %c0_i32_0 : i32, i32
  }
  func.func @transform_5(%arg0: i32) -> (i32, i32) {
    %c0_i32 = arith.constant 0 : i32
    %c0_i32_0 = arith.constant 0 : i32
    %c0_i32_1 = arith.constant 0 : i32
    return %c0_i32, %c0_i32_0 : i32, i32
  }
  func.func @transform_6(%arg0: i32) -> (i32, i32) {
    %c0_i32 = arith.constant 0 : i32
    %c0_i32_0 = arith.constant 0 : i32
    %c0_i32_1 = arith.constant 0 : i32
    return %c0_i32, %c0_i32_0 : i32, i32
  }
  func.func @transform_7(%arg0: i32) -> (i32, i32) {
    %c0_i32 = arith.constant 0 : i32
    %c0_i32_0 = arith.constant 0 : i32
    %c0_i32_1 = arith.constant 0 : i32
    return %c0_i32, %c0_i32_0 : i32, i32
  }
  func.func @transform_8(%arg0: i32) -> (i32, i32, i32) {
    %c0_i32 = arith.constant 0 : i32
    %c0_i32_0 = arith.constant 0 : i32
    %c0_i32_1 = arith.constant 0 : i32
    return %arg0, %c0_i32, %c0_i32_0 : i32, i32, i32
  }
}

</mosaic_0001>

<llo_original>
// kernel: tpu_custom_call.1
$region0: #{tpu_custom_call.1}
  #allocation0 [shape = 'u32[]', space=smem, size = 0x4, offset = 0x4, fixed_abs, tag = 'smem constant byte address 0x4 - core index']
  #allocation1 [shape = 'u32[144,128]{1,0:T(1,128)}', space=vmem, size = 0x12000, scoped, tag = 'internal scratch']
  %s0 = inlined_call_operand.vmem [shape: f32[2,16,256], index: 0, kind: input, shape index: {}]
  %s1 = inlined_call_operand.vmem [shape: f32[16,16], index: 1, kind: input, shape index: {}]
  %s2 = inlined_call_operand.vmem [shape: f32[16,1], index: 2, kind: input, shape index: {}]
  %s3 = inlined_call_operand.vmem [shape: f32[64,16], index: 3, kind: input, shape index: {}]
  %s4 = inlined_call_operand.vmem [shape: f32[16,64], index: 4, kind: input, shape index: {}]
  %s5 = inlined_call_operand.vmem [shape: f32[16,16], index: 5, kind: input, shape index: {}]
  %s6 = inlined_call_operand.vmem [shape: f32[16,1], index: 6, kind: input, shape index: {}]
  %s7 = inlined_call_operand.vmem [shape: f32[16,1], index: 7, kind: input, shape index: {}]
  %s8 = inlined_call_operand.hbm [shape: f32[2,16,256], index: 8, kind: output, shape index: {}]
  %s9 = sld [smem:[#allocation0]]
  $region65: #{tpu_custom_call.1} parent=0
    _
  %s11 = ssub.s32 1, %s9
  %s12 = scalar_select 0, %s11, %s9
  $region1: #{tpu_custom_call.1} parent=0
    #allocation2 [shape = 'u8[32768]{0}', space=vmem, size = 0x8000, scoped, tag = 'output window, operand 0']
    #allocation3 [shape = 's32[2]{0}', space=sflag, size = 0x8, scoped, tag = 'scoped memory for tpu_custom_call.1']
    %13 = vsyncpa [#allocation3], 0
    %s14 = scalar_lea.sflag [#allocation3], 1
    %15 = vsyncpa %s14, 0
    loop: start=0, step=1, limit=4
    $region2: #{tpu_custom_call.1} parent=1 // loop_pre_header
      _
    $region3: #{tpu_custom_call.1} parent=1 // loop_header
      %s17 = sphi 0, %s21
      %p18 = scmp.ge.s32.totalorder %s17, 4
      %s27 = sphi 0, %s29
      %s30 = sphi 0, %s27
      %s31 = sphi 0, %s30
      %s47 = sphi 0, %s31
      %s51 = sphi 0, %s51
      %s53 = sphi 0, %s51
      %s54 = sphi 0, %s53
      %s68 = sphi 0, %s54
      %s72 = sphi 0, %s72
      %s74 = sphi 0, %s72
      %s75 = sphi 0, %s74
      %s89 = sphi 0, %s75
      %s93 = sphi 0, %s93
      %s95 = sphi 0, %s93
      %s96 = sphi 0, %s95
      %s110 = sphi 0, %s96
      %s114 = sphi 0, %s114
      %s116 = sphi 0, %s114
      %s117 = sphi 0, %s116
      %s131 = sphi 0, %s117
      %s135 = sphi 0, %s135
      %s137 = sphi 0, %s135
      %s138 = sphi 0, %s137
      %s152 = sphi 0, %s138
      %s156 = sphi 0, %s156
      %s158 = sphi 0, %s156
      %s159 = sphi 0, %s158
      %s173 = sphi 0, %s159
      %s177 = sphi 0, %s177
      %s179 = sphi 0, %s177
      %s180 = sphi 0, %s179
      %s194 = sphi 0, %s180
      %s200 = sphi 0, %s202
      %s203 = sphi 0, %s200
      %s204 = sphi 0, %s203
      %s220 = sphi 0, %s204
    $region4: #{tpu_custom_call.1} parent=1 // loop_header_branch
      %20 = sbr.rel (%p18) target = $region8
    $region5: #{tpu_custom_call.1} parent=1 // loop_body
      %s22 = ssub.s32 %s17, 1
      %s23 = ssub.s32 %s17, 2
      %s24 = sadd.s32 %s17, 1
      %s25 = ssub.s32 %s17, %s24
      %p26 = scmp.eq.s32.totalorder %s25, 0
      %s28 = sadd.s32 %s27, 1
      %s29 = scalar_select %p26, %s27, %s28
      %p32 = pneg %p26
      %p33 = scmp.eq.s32.totalorder %s17, 1
      %p34 = por %p32, %p33
      %p35 = scmp.ne.s32.totalorder %s27, %s30
      %p36 = scmp.eq.s32.totalorder %s17, 0
      %p37 = por %p35, %p36
      %p38 = scmp.ne.s32.totalorder %s27, %s30
      %p39 = scmp.eq.s32.totalorder %s22, 1
      %p40 = por %p38, %p39
      %p41 = scmp.ne.s32.totalorder %s30, %s31
      %p42 = scmp.eq.s32.totalorder %s22, 0
      %p43 = por %p41, %p42
      %p44 = scmp.ne.s32.totalorder %s30, %s31
      %p45 = scmp.eq.s32.totalorder %s23, 1
      %p46 = por %p44, %p45
      %p48 = scmp.ne.s32.totalorder %s31, %s47
      %p49 = scmp.eq.s32.totalorder %s23, 0
      %p50 = por %p48, %p49
      %s52 = sadd.s32 %s51, 1
      %p55 = scmp.eq.s32.totalorder %s17, 1
      %p56 = scmp.ne.s32.totalorder %s51, %s53
      %p57 = scmp.eq.s32.totalorder %s17, 0
      %p58 = por %p56, %p57
      %p59 = scmp.ne.s32.totalorder %s51, %s53
      %p60 = scmp.eq.s32.totalorder %s22, 1
      %p61 = por %p59, %p60
      %p62 = scmp.ne.s32.totalorder %s53, %s54
      %p63 = scmp.eq.s32.totalorder %s22, 0
      %p64 = por %p62, %p63
      %p65 = scmp.ne.s32.totalorder %s53, %s54
      %p66 = scmp.eq.s32.totalorder %s23, 1
      %p67 = por %p65, %p66
      %p69 = scmp.ne.s32.totalorder %s54, %s68
      %p70 = scmp.eq.s32.totalorder %s23, 0
      %p71 = por %p69, %p70
      %s73 = sadd.s32 %s72, 1
      %p76 = scmp.eq.s32.totalorder %s17, 1
      %p77 = scmp.ne.s32.totalorder %s72, %s74
      %p78 = scmp.eq.s32.totalorder %s17, 0
      %p79 = por %p77, %p78
      %p80 = scmp.ne.s32.totalorder %s72, %s74
      %p81 = scmp.eq.s32.totalorder %s22, 1
      %p82 = por %p80, %p81
      %p83 = scmp.ne.s32.totalorder %s74, %s75
      %p84 = scmp.eq.s32.totalorder %s22, 0
      %p85 = por %p83, %p84
      %p86 = scmp.ne.s32.totalorder %s74, %s75
      %p87 = scmp.eq.s32.totalorder %s23, 1
      %p88 = por %p86, %p87
      %p90 = scmp.ne.s32.totalorder %s75, %s89
      %p91 = scmp.eq.s32.totalorder %s23, 0
      %p92 = por %p90, %p91
      %s94 = sadd.s32 %s93, 1
      %p97 = scmp.eq.s32.totalorder %s17, 1
      %p98 = scmp.ne.s32.totalorder %s93, %s95
      %p99 = scmp.eq.s32.totalorder %s17, 0
      %p100 = por %p98, %p99
      %p101 = scmp.ne.s32.totalorder %s93, %s95
      %p102 = scmp.eq.s32.totalorder %s22, 1
      %p103 = por %p101, %p102
      %p104 = scmp.ne.s32.totalorder %s95, %s96
      %p105 = scmp.eq.s32.totalorder %s22, 0
      %p106 = por %p104, %p105
      %p107 = scmp.ne.s32.totalorder %s95, %s96
      %p108 = scmp.eq.s32.totalorder %s23, 1
      %p109 = por %p107, %p108
      %p111 = scmp.ne.s32.totalorder %s96, %s110
      %p112 = scmp.eq.s32.totalorder %s23, 0
      %p113 = por %p111, %p112
      %s115 = sadd.s32 %s114, 1
      %p118 = scmp.eq.s32.totalorder %s17, 1
      %p119 = scmp.ne.s32.totalorder %s114, %s116
      %p120 = scmp.eq.s32.totalorder %s17, 0
      %p121 = por %p119, %p120
      %p122 = scmp.ne.s32.totalorder %s114, %s116
      %p123 = scmp.eq.s32.totalorder %s22, 1
      %p124 = por %p122, %p123
      %p125 = scmp.ne.s32.totalorder %s116, %s117
      %p126 = scmp.eq.s32.totalorder %s22, 0
      %p127 = por %p125, %p126
      %p128 = scmp.ne.s32.totalorder %s116, %s117
      %p129 = scmp.eq.s32.totalorder %s23, 1
      %p130 = por %p128, %p129
      %p132 = scmp.ne.s32.totalorder %s117, %s131
      %p133 = scmp.eq.s32.totalorder %s23, 0
      %p134 = por %p132, %p133
      %s136 = sadd.s32 %s135, 1
      %p139 = scmp.eq.s32.totalorder %s17, 1
      %p140 = scmp.ne.s32.totalorder %s135, %s137
      %p141 = scmp.eq.s32.totalorder %s17, 0
      %p142 = por %p140, %p141
      %p143 = scmp.ne.s32.totalorder %s135, %s137
      %p144 = scmp.eq.s32.totalorder %s22, 1
      %p145 = por %p143, %p144
      %p146 = scmp.ne.s32.totalorder %s137, %s138
      %p147 = scmp.eq.s32.totalorder %s22, 0
      %p148 = por %p146, %p147
      %p149 = scmp.ne.s32.totalorder %s137, %s138
      %p150 = scmp.eq.s32.totalorder %s23, 1
      %p151 = por %p149, %p150
      %p153 = scmp.ne.s32.totalorder %s138, %s152
      %p154 = scmp.eq.s32.totalorder %s23, 0
      %p155 = por %p153, %p154
      %s157 = sadd.s32 %s156, 1
      %p160 = scmp.eq.s32.totalorder %s17, 1
      %p161 = scmp.ne.s32.totalorder %s156, %s158
      %p162 = scmp.eq.s32.totalorder %s17, 0
      %p163 = por %p161, %p162
      %p164 = scmp.ne.s32.totalorder %s156, %s158
      %p165 = scmp.eq.s32.totalorder %s22, 1
      %p166 = por %p164, %p165
      %p167 = scmp.ne.s32.totalorder %s158, %s159
      %p168 = scmp.eq.s32.totalorder %s22, 0
      %p169 = por %p167, %p168
      %p170 = scmp.ne.s32.totalorder %s158, %s159
      %p171 = scmp.eq.s32.totalorder %s23, 1
      %p172 = por %p170, %p171
      %p174 = scmp.ne.s32.totalorder %s159, %s173
      %p175 = scmp.eq.s32.totalorder %s23, 0
      %p176 = por %p174, %p175
      %s178 = sadd.s32 %s177, 1
      %p181 = scmp.eq.s32.totalorder %s17, 1
      %p182 = scmp.ne.s32.totalorder %s177, %s179
      %p183 = scmp.eq.s32.totalorder %s17, 0
      %p184 = por %p182, %p183
      %p185 = scmp.ne.s32.totalorder %s177, %s179
      %p186 = scmp.eq.s32.totalorder %s22, 1
      %p187 = por %p185, %p186
      %p188 = scmp.ne.s32.totalorder %s179, %s180
      %p189 = scmp.eq.s32.totalorder %s22, 0
      %p190 = por %p188, %p189
      %p191 = scmp.ne.s32.totalorder %s179, %s180
      %p192 = scmp.eq.s32.totalorder %s23, 1
      %p193 = por %p191, %p192
      %p195 = scmp.ne.s32.totalorder %s180, %s194
      %p196 = scmp.eq.s32.totalorder %s23, 0
      %p197 = por %p195, %p196
      %s198 = ssub.s32 %s17, %s24
      %p199 = scmp.eq.s32.totalorder %s198, 0
      %s201 = sadd.s32 %s200, 1
      %s202 = scalar_select %p199, %s200, %s201
      %p205 = pneg %p199
      %p206 = scmp.eq.s32.totalorder %s17, 1
      %p207 = por %p205, %p206
      %p208 = scmp.ne.s32.totalorder %s200, %s203
      %p209 = scmp.eq.s32.totalorder %s17, 0
      %p210 = por %p208, %p209
      %p211 = scmp.ne.s32.totalorder %s200, %s203
      %p212 = scmp.eq.s32.totalorder %s22, 1
      %p213 = por %p211, %p212
      %p214 = scmp.ne.s32.totalorder %s203, %s204
      %p215 = scmp.eq.s32.totalorder %s22, 0
      %p216 = por %p214, %p215
      %p217 = scmp.ne.s32.totalorder %s203, %s204
      %p218 = scmp.eq.s32.totalorder %s23, 1
      %p219 = por %p217, %p218
      %p221 = scmp.ne.s32.totalorder %s204, %s220
      %p222 = scmp.eq.s32.totalorder %s23, 0
      %p223 = por %p221, %p222
      %p224 = scmp.le.s32.totalorder 1, %s17
      %p225 = scmp.lt.s32.totalorder %s17, 3
      %p226 = pnand %p224, %p225
      %p227 = pneg %p226
      // Predicated region
      $region9: #{tpu_custom_call.1} parent=5 // pred_check
        _
      $region10: #{tpu_custom_call.1} parent=5 // pred_check_branch
        %229 = sbr.rel (%p226) target = $region12
      $region11: #{tpu_custom_call.1} parent=5 // pred_region
        %s230 = ssub.s32 %s17, 1
        // Predicated region
        $region13: #{tpu_custom_call.1} parent=11 // pred_check
          %p231 = pneg %p64
        $region14: #{tpu_custom_call.1} parent=11 // pred_check_branch
          %233 = sbr.rel (%p231) target = $region16
        $region15: #{tpu_custom_call.1} parent=11 // pred_region
          _
        $region16: #{tpu_custom_call.1} parent=11 // pred_fallthru
          _
        // Predicated region
        $region17: #{tpu_custom_call.1} parent=11 // pred_check
          %p234 = pneg %p85
        $region18: #{tpu_custom_call.1} parent=11 // pred_check_branch
          %236 = sbr.rel (%p234) target = $region20
        $region19: #{tpu_custom_call.1} parent=11 // pred_region
          _
        $region20: #{tpu_custom_call.1} parent=11 // pred_fallthru
          _
        // Predicated region
        $region21: #{tpu_custom_call.1} parent=11 // pred_check
          %p237 = pneg %p106
        $region22: #{tpu_custom_call.1} parent=11 // pred_check_branch
          %239 = sbr.rel (%p237) target = $region24
        $region23: #{tpu_custom_call.1} parent=11 // pred_region
          _
        $region24: #{tpu_custom_call.1} parent=11 // pred_fallthru
          _
        // Predicated region
        $region25: #{tpu_custom_call.1} parent=11 // pred_check
          %p240 = pneg %p127
        $region26: #{tpu_custom_call.1} parent=11 // pred_check_branch
          %242 = sbr.rel (%p240) target = $region28
        $region27: #{tpu_custom_call.1} parent=11 // pred_region
          _
        $region28: #{tpu_custom_call.1} parent=11 // pred_fallthru
          _
        // Predicated region
        $region29: #{tpu_custom_call.1} parent=11 // pred_check
          %p243 = pneg %p148
        $region30: #{tpu_custom_call.1} parent=11 // pred_check_branch
          %245 = sbr.rel (%p243) target = $region32
        $region31: #{tpu_custom_call.1} parent=11 // pred_region
          _
        $region32: #{tpu_custom_call.1} parent=11 // pred_fallthru
          _
        // Predicated region
        $region33: #{tpu_custom_call.1} parent=11 // pred_check
          %p246 = pneg %p169
        $region34: #{tpu_custom_call.1} parent=11 // pred_check_branch
          %248 = sbr.rel (%p246) target = $region36
        $region35: #{tpu_custom_call.1} parent=11 // pred_region
          _
        $region36: #{tpu_custom_call.1} parent=11 // pred_fallthru
          _
        // Predicated region
        $region37: #{tpu_custom_call.1} parent=11 // pred_check
          %p249 = pneg %p190
        $region38: #{tpu_custom_call.1} parent=11 // pred_check_branch
          %251 = sbr.rel (%p249) target = $region40
        $region39: #{tpu_custom_call.1} parent=11 // pred_region
          _
        $region40: #{tpu_custom_call.1} parent=11 // pred_fallthru
          _
      $region12: #{tpu_custom_call.1} parent=5 // pred_fallthru
        _
      %p252 = scmp.lt.s32.totalorder %s17, 2
      // Predicated region
      $region41: #{tpu_custom_call.1} parent=5 // pred_check
        %p253 = pneg %p252
      $region42: #{tpu_custom_call.1} parent=5 // pred_check_branch
        %255 = sbr.rel (%p253) target = $region44
      $region43: #{tpu_custom_call.1} parent=5 // pred_region
        // Predicated region
        $region45: #{tpu_custom_call.1} parent=43 // pred_check
          %p256 = pneg %p37
        $region46: #{tpu_custom_call.1} parent=43 // pred_check_branch
          %258 = sbr.rel (%p256) target = $region48
        $region47: #{tpu_custom_call.1} parent=43 // pred_region
          %p259 = scmp.lt.s32.totalorder %s17, 1
          %s260 = scalar_select %p259, %s17, 1
          %s261 = smul.addr %s260, 4
          %s262 = smul.addr %s261, 8
          %s263 = scalar_lea.vmem %s0, %s262
        $region48: #{tpu_custom_call.1} parent=43 // pred_fallthru
          _
      $region44: #{tpu_custom_call.1} parent=5 // pred_fallthru
        _
      %p264 = scmp.le.s32.totalorder 1, %s17
      %p265 = scmp.lt.s32.totalorder %s17, 3
      %p266 = pnand %p264, %p265
      %p267 = pneg %p266
      // Predicated region
      $region49: #{tpu_custom_call.1} parent=5 // pred_check
        _
      $region50: #{tpu_custom_call.1} parent=5 // pred_check_branch
        %269 = sbr.rel (%p266) target = $region52
      $region51: #{tpu_custom_call.1} parent=5 // pred_region
        %s270 = ssub.s32 %s17, 1
        %p271 = scmp.lt.s32.totalorder %s22, 1
        %s272 = scalar_select %p271, %s22, 1
        %s273 = smul.addr %s272, 4
        %s274 = smul.addr %s273, 8
        %s275 = scalar_lea.vmem %s0, %s274
        %p276 = pneg %p43
        %p277 = pneg %p40
        %p278 = pneg %p64
        %p279 = pneg %p61
        %p280 = pneg %p85
        %p281 = pneg %p82
        %p282 = pneg %p106
        %p283 = pneg %p103
        %p284 = pneg %p127
        %p285 = pneg %p124
        %p286 = pneg %p148
        %p287 = pneg %p145
        %p288 = pneg %p169
        %p289 = pneg %p166
        %p290 = pneg %p190
        %p291 = pneg %p187
        %p292 = pneg %p216
        %p293 = pneg %p213
        %s294 = sand.u32 %s203, 1
        %s295 = scalar_lea.sflag [#allocation3], %s294
        %s296 = sand.u32 %s203, 1
        %s297 = smul.addr %s296, 32
        %s298 = scalar_lea.vmem [#allocation2], %s297
        %p299 = scmp.lt.s32.totalorder %s22, 1
        %s300 = scalar_select %p299, %s22, 1
        %s301 = smul.addr %s300, 4
        %s302 = smul.addr %s301, 8
        %s303 = scalar_lea.vmem %s0, %s302
        %v304 = vld [vmem:[%s303] sm:$0xff]
        %v305 = vld [vmem:[%s303 + $0x8] sm:$0xff]
        %v306 = vld [vmem:[%s303 + $0x10] sm:$0xff]
        %v307 = vld [vmem:[%s303 + $0x18] sm:$0xff]
        %v308 = vld [vmem:[%s1] sm:$0xff]
        %v309 = vld [vmem:[%s1 + $0x8] sm:$0xff]
        %v310 = vld [vmem:[%s2] sm:$0xff]
        %v311 = vld [vmem:[%s2 + $0x8] sm:$0xff]
        %313 = vset.pattern.permute.xlu0 0
        %314 = vperm.xlu0 %313, %v310
        %v315 = vpop.permute.xlu0 %314
        %318 = vset.pattern.permute.xlu0 0
        %319 = vperm.xlu0 %318, %v311
        %v320 = vpop.permute.xlu0 %319
        %vm322 = vcmask 130048
        %v324 = vsel %vm322, %v308, 0
        %v327 = vsel %vm322, %v309, 0
        %329 = vmatprep.subr.mxu0 %v305
        %330 = vmatpush1.msra.mxu0 %v304
        %331 = vmatprep.subr.mxu0 %v307
        %332 = vmatpush1.msra.mxu0 %v306
        %333 = vmatprep.subr.mxu0 0.0
        %334 = vmatpush1.msra.mxu0 0.0
        %335 = vmatprep.subr.mxu0 0.0
        %336 = vmatpush1.msra.mxu0 0.0
        %337 = vmatprep.subr.mxu0 0.0
        %338 = vmatpush1.msra.mxu0 0.0
        %339 = vmatprep.subr.mxu0 0.0
        %340 = vmatpush1.msra.mxu0 0.0
        %341 = vmatprep.subr.mxu0 0.0
        %342 = vmatpush1.msra.mxu0 0.0
        %343 = vmatprep.subr.mxu0 0.0
        %344 = vmatpush1.msra.mxu0 0.0
        %345 = vmatprep.subr.mxu0 0.0
        %346 = vmatpush1.msra.mxu0 0.0
        %347 = vmatprep.subr.mxu0 0.0
        %348 = vmatpush1.msra.mxu0 0.0
        %349 = vmatprep.subr.mxu0 0.0
        %350 = vmatpush1.msra.mxu0 0.0
        %351 = vmatprep.subr.mxu0 0.0
        %352 = vmatpush1.msra.mxu0 0.0
        %353 = vmatprep.subr.mxu0 0.0
        %354 = vmatpush1.msra.mxu0 0.0
        %355 = vmatprep.subr.mxu0 0.0
        %356 = vmatpush1.msra.mxu0 0.0
        %357 = vmatprep.subr.mxu0 0.0
        %358 = vmatpush1.msra.mxu0 0.0
        %359 = vmatprep.subr.mxu0 0.0
        %360 = vmatpush1.msra.mxu0 0.0
        %361 = vmatprep.subr.mxu0 0.0
        %362 = vmatpush1.msra.mxu0 0.0
        %363 = vmatprep.subr.mxu0 0.0
        %364 = vmatpush1.msra.mxu0 0.0
        %365 = vmatprep.subr.mxu0 0.0
        %366 = vmatpush1.msra.mxu0 0.0
        %367 = vmatprep.subr.mxu0 0.0
        %368 = vmatpush1.msra.mxu0 0.0
        %369 = vmatprep.subr.mxu0 0.0
        %370 = vmatpush1.msra.mxu0 0.0
        %371 = vmatprep.subr.mxu0 0.0
        %372 = vmatpush1.msra.mxu0 0.0
        %373 = vmatprep.subr.mxu0 0.0
        %374 = vmatpush1.msra.mxu0 0.0
        %375 = vmatprep.subr.mxu0 0.0
        %376 = vmatpush1.msra.mxu0 0.0
        %377 = vmatprep.subr.mxu0 0.0
        %378 = vmatpush1.msra.mxu0 0.0
        %379 = vmatprep.subr.mxu0 0.0
        %380 = vmatpush1.msra.mxu0 0.0
        %381 = vmatprep.subr.mxu0 0.0
        %382 = vmatpush1.msra.mxu0 0.0
        %383 = vmatprep.subr.mxu0 0.0
        %384 = vmatpush1.msra.mxu0 0.0
        %385 = vmatprep.subr.mxu0 0.0
        %386 = vmatpush1.msra.mxu0 0.0
        %387 = vmatprep.subr.mxu0 0.0
        %388 = vmatpush1.msra.mxu0 0.0
        %389 = vmatprep.subr.mxu0 0.0
        %390 = vmatpush1.msra.mxu0 0.0
        %391 = vmatprep.subr.mxu0 0.0
        %392 = vmatpush1.msra.mxu0 0.0
        %393 = vmatprep.mubr.f32.mxu0 0.0
        %394 = vmatmul.mubr.f32.gmra.mrb[0].mxu0 %v324
        %v395 = vpop.f32.mrb[0].mxu0
        %v396 = vadd.f32 %v315, %v395
        %v397 = vpop.f32.mrb[0].mxu0
        %v398 = vadd.f32 %v315, %v397
        %399 = vmatprep.mubr.f32.mxu0 0.0
        %400 = vmatmul.mubr.f32.gmra.mrb[0].mxu0 %v327
        %v401 = vpop.f32.mrb[0].mxu0
        %v402 = vadd.f32 %v320, %v401
        %v403 = vpop.f32.mrb[0].mxu0
        %v404 = vadd.f32 %v320, %v403
        %405 = vdwg.mxu0
        %v406 = vld [vmem:[%s3] sm:$0xff]
        %v407 = vld [vmem:[%s3 + $0x8] sm:$0xff]
        %v408 = vld [vmem:[%s3 + $0x10] sm:$0xff]
        %v409 = vld [vmem:[%s3 + $0x18] sm:$0xff]
        %v410 = vld [vmem:[%s3 + $0x20] sm:$0xff]
        %v411 = vld [vmem:[%s3 + $0x28] sm:$0xff]
        %v412 = vld [vmem:[%s3 + $0x30] sm:$0xff]
        %v413 = vld [vmem:[%s3 + $0x38] sm:$0xff]
        %v415 = vsel %vm322, %v406, 0
        %v418 = vsel %vm322, %v407, 0
        %v421 = vsel %vm322, %v408, 0
        %v424 = vsel %vm322, %v409, 0
        %v427 = vsel %vm322, %v410, 0
        %v430 = vsel %vm322, %v411, 0
        %v433 = vsel %vm322, %v412, 0
        %v436 = vsel %vm322, %v413, 0
        %438 = vmatprep.subr.mxu0 %v398
        %439 = vmatpush1.msra.mxu0 %v396
        %440 = vmatprep.subr.mxu0 %v404
        %441 = vmatpush1.msra.mxu0 %v402
        %442 = vmatprep.subr.mxu0 0.0
        %443 = vmatpush1.msra.mxu0 0.0
        %444 = vmatprep.subr.mxu0 0.0
        %445 = vmatpush1.msra.mxu0 0.0
        %446 = vmatprep.subr.mxu0 0.0
        %447 = vmatpush1.msra.mxu0 0.0
        %448 = vmatprep.subr.mxu0 0.0
        %449 = vmatpush1.msra.mxu0 0.0
        %450 = vmatprep.subr.mxu0 0.0
        %451 = vmatpush1.msra.mxu0 0.0
        %452 = vmatprep.subr.mxu0 0.0
        %453 = vmatpush1.msra.mxu0 0.0
        %454 = vmatprep.subr.mxu0 0.0
        %455 = vmatpush1.msra.mxu0 0.0
        %456 = vmatprep.subr.mxu0 0.0
        %457 = vmatpush1.msra.mxu0 0.0
        %458 = vmatprep.subr.mxu0 0.0
        %459 = vmatpush1.msra.mxu0 0.0
        %460 = vmatprep.subr.mxu0 0.0
        %461 = vmatpush1.msra.mxu0 0.0
        %462 = vmatprep.subr.mxu0 0.0
        %463 = vmatpush1.msra.mxu0 0.0
        %464 = vmatprep.subr.mxu0 0.0
        %465 = vmatpush1.msra.mxu0 0.0
        %466 = vmatprep.subr.mxu0 0.0
        %467 = vmatpush1.msra.mxu0 0.0
        %468 = vmatprep.subr.mxu0 0.0
        %469 = vmatpush1.msra.mxu0 0.0
        %470 = vmatprep.subr.mxu0 0.0
        %471 = vmatpush1.msra.mxu0 0.0
        %472 = vmatprep.subr.mxu0 0.0
        %473 = vmatpush1.msra.mxu0 0.0
        %474 = vmatprep.subr.mxu0 0.0
        %475 = vmatpush1.msra.mxu0 0.0
        %476 = vmatprep.subr.mxu0 0.0
        %477 = vmatpush1.msra.mxu0 0.0
        %478 = vmatprep.subr.mxu0 0.0
        %479 = vmatpush1.msra.mxu0 0.0
        %480 = vmatprep.subr.mxu0 0.0
        %481 = vmatpush1.msra.mxu0 0.0
        %482 = vmatprep.subr.mxu0 0.0
        %483 = vmatpush1.msra.mxu0 0.0
        %484 = vmatprep.subr.mxu0 0.0
        %485 = vmatpush1.msra.mxu0 0.0
        %486 = vmatprep.subr.mxu0 0.0
        %487 = vmatpush1.msra.mxu0 0.0
        %488 = vmatprep.subr.mxu0 0.0
        %489 = vmatpush1.msra.mxu0 0.0
        %490 = vmatprep.subr.mxu0 0.0
        %491 = vmatpush1.msra.mxu0 0.0
        %492 = vmatprep.subr.mxu0 0.0
        %493 = vmatpush1.msra.mxu0 0.0
        %494 = vmatprep.subr.mxu0 0.0
        %495 = vmatpush1.msra.mxu0 0.0
        %496 = vmatprep.subr.mxu0 0.0
        %497 = vmatpush1.msra.mxu0 0.0
        %498 = vmatprep.subr.mxu0 0.0
        %499 = vmatpush1.msra.mxu0 0.0
        %500 = vmatprep.subr.mxu0 0.0
        %501 = vmatpush1.msra.mxu0 0.0
        %502 = vmatprep.mubr.f32.mxu0 0.0
        %503 = vmatmul.mubr.f32.gmra.mrb[0].mxu0 %v415
        %v504 = vpop.f32.mrb[0].mxu0
        %v505 = vadd.f32 0.0, %v504
        %v506 = vpop.f32.mrb[0].mxu0
        %v507 = vadd.f32 0.0, %v506
        %508 = vmatprep.mubr.f32.mxu0 0.0
        %509 = vmatmul.mubr.f32.gmra.mrb[0].mxu0 %v418
        %v510 = vpop.f32.mrb[0].mxu0
        %v511 = vadd.f32 0.0, %v510
        %v512 = vpop.f32.mrb[0].mxu0
        %v513 = vadd.f32 0.0, %v512
        %514 = vmatprep.mubr.f32.mxu0 0.0
        %515 = vmatmul.mubr.f32.gmra.mrb[0].mxu0 %v421
        %v516 = vpop.f32.mrb[0].mxu0
        %v517 = vadd.f32 0.0, %v516
        %v518 = vpop.f32.mrb[0].mxu0
        %v519 = vadd.f32 0.0, %v518
        %520 = vmatprep.mubr.f32.mxu0 0.0
        %521 = vmatmul.mubr.f32.gmra.mrb[0].mxu0 %v424
        %v522 = vpop.f32.mrb[0].mxu0
        %v523 = vadd.f32 0.0, %v522
        %v524 = vpop.f32.mrb[0].mxu0
        %v525 = vadd.f32 0.0, %v524
        %526 = vmatprep.mubr.f32.mxu0 0.0
        %527 = vmatmul.mubr.f32.gmra.mrb[0].mxu0 %v427
        %v528 = vpop.f32.mrb[0].mxu0
        %v529 = vadd.f32 0.0, %v528
        %v530 = vpop.f32.mrb[0].mxu0
        %v531 = vadd.f32 0.0, %v530
        %532 = vmatprep.mubr.f32.mxu0 0.0
        %533 = vmatmul.mubr.f32.gmra.mrb[0].mxu0 %v430
        %v534 = vpop.f32.mrb[0].mxu0
        %v535 = vadd.f32 0.0, %v534
        %v536 = vpop.f32.mrb[0].mxu0
        %v537 = vadd.f32 0.0, %v536
        %538 = vmatprep.mubr.f32.mxu0 0.0
        %539 = vmatmul.mubr.f32.gmra.mrb[0].mxu0 %v433
        %v540 = vpop.f32.mrb[0].mxu0
        %v541 = vadd.f32 0.0, %v540
        %v542 = vpop.f32.mrb[0].mxu0
        %v543 = vadd.f32 0.0, %v542
        %544 = vmatprep.mubr.f32.mxu0 0.0
        %545 = vmatmul.mubr.f32.gmra.mrb[0].mxu0 %v436
        %v546 = vpop.f32.mrb[0].mxu0
        %v547 = vadd.f32 0.0, %v546
        %v548 = vpop.f32.mrb[0].mxu0
        %v549 = vadd.f32 0.0, %v548
        %550 = vdwg.mxu0
        %v551 = vmax.f32 %v505, %v507
        %552 = vmax.xlane.f32.xlu0 %v551
        %v553 = vpop.xlane.xlu0 %552
        %v554 = vmax.f32 %v511, %v513
        %555 = vmax.xlane.f32.xlu0 %v554
        %v556 = vpop.xlane.xlu0 %555
        %v557 = vmax.f32 %v517, %v519
        %558 = vmax.xlane.f32.xlu0 %v557
        %v559 = vpop.xlane.xlu0 %558
        %v560 = vmax.f32 %v523, %v525
        %561 = vmax.xlane.f32.xlu0 %v560
        %v562 = vpop.xlane.xlu0 %561
        %v563 = vmax.f32 %v529, %v531
        %564 = vmax.xlane.f32.xlu0 %v563
        %v565 = vpop.xlane.xlu0 %564
        %v566 = vmax.f32 %v535, %v537
        %567 = vmax.xlane.f32.xlu0 %v566
        %v568 = vpop.xlane.xlu0 %567
        %v569 = vmax.f32 %v541, %v543
        %570 = vmax.xlane.f32.xlu0 %v569
        %v571 = vpop.xlane.xlu0 %570
        %v572 = vmax.f32 %v547, %v549
        %573 = vmax.xlane.f32.xlu0 %v572
        %v574 = vpop.xlane.xlu0 %573
        %v575 = vsub.f32 %v505, %v553
        %v576 = vsub.f32 %v507, %v553
        %v577 = vsub.f32 %v511, %v556
        %v578 = vsub.f32 %v513, %v556
        %v579 = vsub.f32 %v517, %v559
        %v580 = vsub.f32 %v519, %v559
        %v581 = vsub.f32 %v523, %v562
        %v582 = vsub.f32 %v525, %v562
        %v583 = vsub.f32 %v529, %v565
        %v584 = vsub.f32 %v531, %v565
        %v585 = vsub.f32 %v535, %v568
        %v586 = vsub.f32 %v537, %v568
        %v587 = vsub.f32 %v541, %v571
        %v588 = vsub.f32 %v543, %v571
        %v589 = vsub.f32 %v547, %v574
        %v590 = vsub.f32 %v549, %v574
        %v591 = vmul.f32 %v575, 1.442695
        %v592 = vpow.pop %v591
        %v593 = vmul.f32 %v576, 1.442695
        %v594 = vpow.pop %v593
        %v595 = vmul.f32 %v577, 1.442695
        %v596 = vpow.pop %v595
        %v597 = vmul.f32 %v578, 1.442695
        %v598 = vpow.pop %v597
        %v599 = vmul.f32 %v579, 1.442695
        %v600 = vpow.pop %v599
        %v601 = vmul.f32 %v580, 1.442695
        %v602 = vpow.pop %v601
        %v603 = vmul.f32 %v581, 1.442695
        %v604 = vpow.pop %v603
        %v605 = vmul.f32 %v582, 1.442695
        %v606 = vpow.pop %v605
        %v607 = vmul.f32 %v583, 1.442695
        %v608 = vpow.pop %v607
        %v609 = vmul.f32 %v584, 1.442695
        %v610 = vpow.pop %v609
        %v611 = vmul.f32 %v585, 1.442695
        %v612 = vpow.pop %v611
        %v613 = vmul.f32 %v586, 1.442695
        %v614 = vpow.pop %v613
        %v615 = vmul.f32 %v587, 1.442695
        %v616 = vpow.pop %v615
        %v617 = vmul.f32 %v588, 1.442695
        %v618 = vpow.pop %v617
        %v619 = vmul.f32 %v589, 1.442695
        %v620 = vpow.pop %v619
        %v621 = vmul.f32 %v590, 1.442695
        %v622 = vpow.pop %v621
        %v623 = vadd.f32 %v592, %v594
        %624 = vadd.xlane.f32.xlu0 %v623
        %v625 = vpop.xlane.xlu0 %624
        %v626 = vadd.f32 %v596, %v598
        %627 = vadd.xlane.f32.xlu0 %v626
        %v628 = vpop.xlane.xlu0 %627
        %v629 = vadd.f32 %v600, %v602
        %630 = vadd.xlane.f32.xlu0 %v629
        %v631 = vpop.xlane.xlu0 %630
        %v632 = vadd.f32 %v604, %v606
        %633 = vadd.xlane.f32.xlu0 %v632
        %v634 = vpop.xlane.xlu0 %633
        %v635 = vadd.f32 %v608, %v610
        %636 = vadd.xlane.f32.xlu0 %v635
        %v637 = vpop.xlane.xlu0 %636
        %v638 = vadd.f32 %v612, %v614
        %639 = vadd.xlane.f32.xlu0 %v638
        %v640 = vpop.xlane.xlu0 %639
        %v641 = vadd.f32 %v616, %v618
        %642 = vadd.xlane.f32.xlu0 %v641
        %v643 = vpop.xlane.xlu0 %642
        %v644 = vadd.f32 %v620, %v622
        %645 = vadd.xlane.f32.xlu0 %v644
        %v646 = vpop.xlane.xlu0 %645
        %v647 = vrcp.pop %v625
        %v648 = vmul.f32 %v592, %v647
        %v649 = vmul.f32 %v594, %v647
        %v650 = vrcp.pop %v628
        %v651 = vmul.f32 %v596, %v650
        %v652 = vmul.f32 %v598, %v650
        %v653 = vrcp.pop %v631
        %v654 = vmul.f32 %v600, %v653
        %v655 = vmul.f32 %v602, %v653
        %v656 = vrcp.pop %v634
        %v657 = vmul.f32 %v604, %v656
        %v658 = vmul.f32 %v606, %v656
        %v659 = vrcp.pop %v637
        %v660 = vmul.f32 %v608, %v659
        %v661 = vmul.f32 %v610, %v659
        %v662 = vrcp.pop %v640
        %v663 = vmul.f32 %v612, %v662
        %v664 = vmul.f32 %v614, %v662
        %v665 = vrcp.pop %v643
        %v666 = vmul.f32 %v616, %v665
        %v667 = vmul.f32 %v618, %v665
        %v668 = vrcp.pop %v646
        %v669 = vmul.f32 %v620, %v668
        %v670 = vmul.f32 %v622, %v668
        %v671 = vadd.f32 %v648, %v651
        %v672 = vadd.f32 %v671, %v654
        %v673 = vadd.f32 %v672, %v657
        %v674 = vadd.f32 %v673, %v660
        %v675 = vadd.f32 %v674, %v663
        %v676 = vadd.f32 %v675, %v666
        %v677 = vadd.f32 %v676, %v669
        %v678 = vrot.slane %v677, 4
        %v679 = vadd.f32 %v677, %v678
        %v680 = vrot.slane %v679, 2
        %v681 = vadd.f32 %v679, %v680
        %v682 = vrot.slane %v681, 1
        %v683 = vadd.f32 %v681, %v682
        %v684 = vadd.f32 %v649, %v652
        %v685 = vadd.f32 %v684, %v655
        %v686 = vadd.f32 %v685, %v658
        %v687 = vadd.f32 %v686, %v661
        %v688 = vadd.f32 %v687, %v664
        %v689 = vadd.f32 %v688, %v667
        %v690 = vadd.f32 %v689, %v670
        %v691 = vrot.slane %v690, 4
        %v692 = vadd.f32 %v690, %v691
        %v693 = vrot.slane %v692, 2
        %v694 = vadd.f32 %v692, %v693
        %v695 = vrot.slane %v694, 1
        %v696 = vadd.f32 %v694, %v695
        %v697 = vadd.f32 %v683, 1e-09
        %v698 = vadd.f32 %v696, 1e-09
        %v699 = vrcp.pop %v697
        %v700 = vmul.f32 %v648, %v699
        %v701 = vrcp.pop %v698
        %v702 = vmul.f32 %v649, %v701
        %v703 = vmul.f32 %v651, %v699
        %v704 = vmul.f32 %v652, %v701
        %v705 = vmul.f32 %v654, %v699
        %v706 = vmul.f32 %v655, %v701
        %v707 = vmul.f32 %v657, %v699
        %v708 = vmul.f32 %v658, %v701
        %v709 = vmul.f32 %v660, %v699
        %v710 = vmul.f32 %v661, %v701
        %v711 = vmul.f32 %v663, %v699
        %v712 = vmul.f32 %v664, %v701
        %v713 = vmul.f32 %v666, %v699
        %v714 = vmul.f32 %v667, %v701
        %v715 = vmul.f32 %v669, %v699
        %v716 = vmul.f32 %v670, %v701
        %v717 = vld [vmem:[%s4] sm:$0xff]
        %v718 = vld [vmem:[%s4 + $0x8] sm:$0xff]
        %vm719 = vcmask 523264
        %v721 = vsel %vm719, %v717, 0
        %v724 = vsel %vm719, %v718, 0
        %726 = vmatprep.subr.mxu0 %v702
        %727 = vmatpush1.msra.mxu0 %v700
        %728 = vmatprep.subr.mxu0 %v704
        %729 = vmatpush1.msra.mxu0 %v703
        %730 = vmatprep.subr.mxu0 %v706
        %731 = vmatpush1.msra.mxu0 %v705
        %732 = vmatprep.subr.mxu0 %v708
        %733 = vmatpush1.msra.mxu0 %v707
        %734 = vmatprep.subr.mxu0 %v710
        %735 = vmatpush1.msra.mxu0 %v709
        %736 = vmatprep.subr.mxu0 %v712
        %737 = vmatpush1.msra.mxu0 %v711
        %738 = vmatprep.subr.mxu0 %v714
        %739 = vmatpush1.msra.mxu0 %v713
        %740 = vmatprep.subr.mxu0 %v716
        %741 = vmatpush1.msra.mxu0 %v715
        %742 = vmatprep.subr.mxu0 0.0
        %743 = vmatpush1.msra.mxu0 0.0
        %744 = vmatprep.subr.mxu0 0.0
        %745 = vmatpush1.msra.mxu0 0.0
        %746 = vmatprep.subr.mxu0 0.0
        %747 = vmatpush1.msra.mxu0 0.0
        %748 = vmatprep.subr.mxu0 0.0
        %749 = vmatpush1.msra.mxu0 0.0
        %750 = vmatprep.subr.mxu0 0.0
        %751 = vmatpush1.msra.mxu0 0.0
        %752 = vmatprep.subr.mxu0 0.0
        %753 = vmatpush1.msra.mxu0 0.0
        %754 = vmatprep.subr.mxu0 0.0
        %755 = vmatpush1.msra.mxu0 0.0
        %756 = vmatprep.subr.mxu0 0.0
        %757 = vmatpush1.msra.mxu0 0.0
        %758 = vmatprep.subr.mxu0 0.0
        %759 = vmatpush1.msra.mxu0 0.0
        %760 = vmatprep.subr.mxu0 0.0
        %761 = vmatpush1.msra.mxu0 0.0
        %762 = vmatprep.subr.mxu0 0.0
        %763 = vmatpush1.msra.mxu0 0.0
        %764 = vmatprep.subr.mxu0 0.0
        %765 = vmatpush1.msra.mxu0 0.0
        %766 = vmatprep.subr.mxu0 0.0
        %767 = vmatpush1.msra.mxu0 0.0
        %768 = vmatprep.subr.mxu0 0.0
        %769 = vmatpush1.msra.mxu0 0.0
        %770 = vmatprep.subr.mxu0 0.0
        %771 = vmatpush1.msra.mxu0 0.0
        %772 = vmatprep.subr.mxu0 0.0
        %773 = vmatpush1.msra.mxu0 0.0
        %774 = vmatprep.subr.mxu0 0.0
        %775 = vmatpush1.msra.mxu0 0.0
        %776 = vmatprep.subr.mxu0 0.0
        %777 = vmatpush1.msra.mxu0 0.0
        %778 = vmatprep.subr.mxu0 0.0
        %779 = vmatpush1.msra.mxu0 0.0
        %780 = vmatprep.subr.mxu0 0.0
        %781 = vmatpush1.msra.mxu0 0.0
        %782 = vmatprep.subr.mxu0 0.0
        %783 = vmatpush1.msra.mxu0 0.0
        %784 = vmatprep.subr.mxu0 0.0
        %785 = vmatpush1.msra.mxu0 0.0
        %786 = vmatprep.subr.mxu0 0.0
        %787 = vmatpush1.msra.mxu0 0.0
        %788 = vmatprep.subr.mxu0 0.0
        %789 = vmatpush1.msra.mxu0 0.0
        %790 = vmatprep.mubr.f32.mxu0 0.0
        %791 = vmatmul.mubr.f32.gmra.mrb[0].mxu0 %v721
        %v792 = vpop.f32.mrb[0].mxu0
        %v793 = vadd.f32 0.0, %v792
        %v794 = vpop.f32.mrb[0].mxu0
        %v795 = vadd.f32 0.0, %v794
        %796 = vmatprep.mubr.f32.mxu0 0.0
        %797 = vmatmul.mubr.f32.gmra.mrb[0].mxu0 %v724
        %v798 = vpop.f32.mrb[0].mxu0
        %v799 = vadd.f32 0.0, %v798
        %v800 = vpop.f32.mrb[0].mxu0
        %v801 = vadd.f32 0.0, %v800
        %802 = vdwg.mxu0
        %v803 = vld [vmem:[%s5] sm:$0xff]
        %v804 = vld [vmem:[%s5 + $0x8] sm:$0xff]
        %v806 = vsel %vm322, %v803, 0
        %v809 = vsel %vm322, %v804, 0
        %811 = vmatprep.subr.mxu0 %v795
        %812 = vmatpush1.msra.mxu0 %v793
        %813 = vmatprep.subr.mxu0 %v801
        %814 = vmatpush1.msra.mxu0 %v799
        %815 = vmatprep.subr.mxu0 0.0
        %816 = vmatpush1.msra.mxu0 0.0
        %817 = vmatprep.subr.mxu0 0.0
        %818 = vmatpush1.msra.mxu0 0.0
        %819 = vmatprep.subr.mxu0 0.0
        %820 = vmatpush1.msra.mxu0 0.0
        %821 = vmatprep.subr.mxu0 0.0
        %822 = vmatpush1.msra.mxu0 0.0
        %823 = vmatprep.subr.mxu0 0.0
        %824 = vmatpush1.msra.mxu0 0.0
        %825 = vmatprep.subr.mxu0 0.0
        %826 = vmatpush1.msra.mxu0 0.0
        %827 = vmatprep.subr.mxu0 0.0
        %828 = vmatpush1.msra.mxu0 0.0
        %829 = vmatprep.subr.mxu0 0.0
        %830 = vmatpush1.msra.mxu0 0.0
        %831 = vmatprep.subr.mxu0 0.0
        %832 = vmatpush1.msra.mxu0 0.0
        %833 = vmatprep.subr.mxu0 0.0
        %834 = vmatpush1.msra.mxu0 0.0
        %835 = vmatprep.subr.mxu0 0.0
        %836 = vmatpush1.msra.mxu0 0.0
        %837 = vmatprep.subr.mxu0 0.0
        %838 = vmatpush1.msra.mxu0 0.0
        %839 = vmatprep.subr.mxu0 0.0
        %840 = vmatpush1.msra.mxu0 0.0
        %841 = vmatprep.subr.mxu0 0.0
        %842 = vmatpush1.msra.mxu0 0.0
        %843 = vmatprep.subr.mxu0 0.0
        %844 = vmatpush1.msra.mxu0 0.0
        %845 = vmatprep.subr.mxu0 0.0
        %846 = vmatpush1.msra.mxu0 0.0
        %847 = vmatprep.subr.mxu0 0.0
        %848 = vmatpush1.msra.mxu0 0.0
        %849 = vmatprep.subr.mxu0 0.0
        %850 = vmatpush1.msra.mxu0 0.0
        %851 = vmatprep.subr.mxu0 0.0
        %852 = vmatpush1.msra.mxu0 0.0
        %853 = vmatprep.subr.mxu0 0.0
        %854 = vmatpush1.msra.mxu0 0.0
        %855 = vmatprep.subr.mxu0 0.0
        %856 = vmatpush1.msra.mxu0 0.0
        %857 = vmatprep.subr.mxu0 0.0
        %858 = vmatpush1.msra.mxu0 0.0
        %859 = vmatprep.subr.mxu0 0.0
        %860 = vmatpush1.msra.mxu0 0.0
        %861 = vmatprep.subr.mxu0 0.0
        %862 = vmatpush1.msra.mxu0 0.0
        %863 = vmatprep.subr.mxu0 0.0
        %864 = vmatpush1.msra.mxu0 0.0
        %865 = vmatprep.subr.mxu0 0.0
        %866 = vmatpush1.msra.mxu0 0.0
        %867 = vmatprep.subr.mxu0 0.0
        %868 = vmatpush1.msra.mxu0 0.0
        %869 = vmatprep.subr.mxu0 0.0
        %870 = vmatpush1.msra.mxu0 0.0
        %871 = vmatprep.subr.mxu0 0.0
        %872 = vmatpush1.msra.mxu0 0.0
        %873 = vmatprep.subr.mxu0 0.0
        %874 = vmatpush1.msra.mxu0 0.0
        %875 = vmatprep.mubr.f32.mxu0 0.0
        %876 = vmatmul.mubr.f32.gmra.mrb[0].mxu0 %v806
        %v877 = vpop.f32.mrb[0].mxu0
        %v878 = vadd.f32 0.0, %v877
        %v879 = vpop.f32.mrb[0].mxu0
        %v880 = vadd.f32 0.0, %v879
        %881 = vmatprep.mubr.f32.mxu0 0.0
        %882 = vmatmul.mubr.f32.gmra.mrb[0].mxu0 %v809
        %v883 = vpop.f32.mrb[0].mxu0
        %v884 = vadd.f32 0.0, %v883
        %v885 = vpop.f32.mrb[0].mxu0
        %v886 = vadd.f32 0.0, %v885
        %887 = vdwg.mxu0
        %v888 = vld [vmem:[%s6] sm:$0xff]
        %v889 = vld [vmem:[%s6 + $0x8] sm:$0xff]
        %891 = vset.pattern.permute.xlu0 0
        %892 = vperm.xlu0 %891, %v888
        %v893 = vpop.permute.xlu0 %892
        %896 = vset.pattern.permute.xlu0 0
        %897 = vperm.xlu0 %896, %v889
        %v898 = vpop.permute.xlu0 %897
        %v900 = vmul.f32 %v878, %v893
        %v901 = vmul.f32 %v880, %v893
        %v902 = vmul.f32 %v884, %v898
        %v903 = vmul.f32 %v886, %v898
        %v904 = vld [vmem:[%s7] sm:$0xff]
        %v905 = vld [vmem:[%s7 + $0x8] sm:$0xff]
        %907 = vset.pattern.permute.xlu0 0
        %908 = vperm.xlu0 %907, %v904
        %v909 = vpop.permute.xlu0 %908
        %912 = vset.pattern.permute.xlu0 0
        %913 = vperm.xlu0 %912, %v905
        %v914 = vpop.permute.xlu0 %913
        %v916 = vadd.f32 %v900, %v909
        %v917 = vadd.f32 %v901, %v909
        %v918 = vadd.f32 %v902, %v914
        %v919 = vadd.f32 %v903, %v914
        %v920 = vadd.f32 %v916, %v304
        %v921 = vadd.f32 %v917, %v305
        %v922 = vadd.f32 %v918, %v306
        %v923 = vadd.f32 %v919, %v307
        %v924 = vmax.f32 %v920, 0.0
        %v925 = vmax.f32 %v921, 0.0
        %v926 = vmax.f32 %v922, 0.0
        %v927 = vmax.f32 %v923, 0.0
        %928 = vst [vmem:[%s298] sm:$0xff] %v924
        %929 = vst [vmem:[%s298 + $0x8] sm:$0xff] %v925
        %930 = vst [vmem:[%s298 + $0x10] sm:$0xff] %v926
        %931 = vst [vmem:[%s298 + $0x18] sm:$0xff] %v927
        %s932 = sand.u32 %s203, 1
        %s933 = scalar_lea.sflag [#allocation3], %s932
        %s934 = sand.u32 %s203, 1
        %s935 = smul.addr %s934, 32
        %s936 = scalar_lea.vmem [#allocation2], %s935
        // Predicated region
        $region53: #{tpu_custom_call.1} parent=51 // pred_check
          %p937 = pneg %p213
        $region54: #{tpu_custom_call.1} parent=51 // pred_check_branch
          %939 = sbr.rel (%p937) target = $region56
        $region55: #{tpu_custom_call.1} parent=51 // pred_region
          %s941 = ssub.s32 512, 512
          %942 = vsyncadd %s933, %s941
          %s943 = smul.addr %s22, 4
          %s944 = smul.addr %s943, 128
          %s945 = scalar_lea.hbm %s8, %s944
          %s946 = sshll.u32 %s936, 4
          %s947 = int_to_ptr.vmem [resolvable:$true] %s946
          %952 = dma.vmem_to_hbm [thread:$0]  %s947, 512, %s945, %s933, 256, 256, 16
        $region56: #{tpu_custom_call.1} parent=51 // pred_fallthru
          _
      $region52: #{tpu_custom_call.1} parent=5 // pred_fallthru
        _
      %p953 = scmp.le.s32.totalorder 2, %s17
      // Predicated region
      $region57: #{tpu_custom_call.1} parent=5 // pred_check
        %p954 = pneg %p953
      $region58: #{tpu_custom_call.1} parent=5 // pred_check_branch
        %956 = sbr.rel (%p954) target = $region60
      $region59: #{tpu_custom_call.1} parent=5 // pred_region
        %s957 = ssub.s32 %s17, 2
        // Predicated region
        $region61: #{tpu_custom_call.1} parent=59 // pred_check
          %p958 = pneg %p219
        $region62: #{tpu_custom_call.1} parent=59 // pred_check_branch
          %960 = sbr.rel (%p958) target = $region64
        $region63: #{tpu_custom_call.1} parent=59 // pred_region
          %s961 = sand.u32 %s204, 1
          %s962 = scalar_lea.sflag [#allocation3], %s961
          %s963 = sand.u32 %s204, 1
          %s964 = smul.addr %s963, 32
          %s965 = scalar_lea.vmem [#allocation2], %s964
          %966 = dma.done %s962, 512
        $region64: #{tpu_custom_call.1} parent=59 // pred_fallthru
          _
      $region60: #{tpu_custom_call.1} parent=5 // pred_fallthru
        _
    $region6: #{tpu_custom_call.1} parent=1 // loop_footer
      %s21 = sadd.s32 1, %s17
    $region7: #{tpu_custom_call.1} parent=1 // loop_footer_branch
      %16 = sbr.rel target = $region3
    $region8: #{tpu_custom_call.1} parent=1 // loop_exit
      _
    %967 = vsyncpa [#allocation3], 1
    %s968 = scalar_lea.sflag [#allocation3], 1
    %969 = vsyncpa %s968, 1

</llo_original>
